<compile_context>
chip_gen: v7x
topology: tpu7x:2x2x1
jax: 0.10.0
libtpu: 0.0.40
codegen_flags: <defaults>
</compile_context>

<pallas_src>
import jax
import jax.numpy as jnp
from jax.experimental import pallas as pl
from jax.experimental.pallas import tpu as pltpu


def _mlp2_kernel(x_ref, w1_ref, b1_ref, w2_ref, b2_ref, o_ref):
    # x_ref  : (2D, tm)     bf16  gathered+concatenated edge features (edges on lanes)
    # w1_ref : (H_pad, 2D)  bf16  first-layer weight (torch layout, H zero-padded)
    # b1_ref : (H_pad, 1)   f32   first-layer bias column (broadcast over lanes)
    # w2_ref : (1, H_pad)   f32   second-layer weight row
    # b2_ref : (1, 1)       f32
    # o_ref  : (1, tm)      f32   lane-dense output block
    h = jnp.dot(w1_ref[...], x_ref[...],
                preferred_element_type=jnp.float32)            # (H_pad, tm)
    h = jnp.maximum(h + b1_ref[...], 0.0)                      # bias + ReLU, f32

    # Layer 2: (1, H_pad) @ (H_pad, tm) -> (1, tm); edges stay on the lane axis.
    out = jnp.dot(w2_ref[...], h, preferred_element_type=jnp.float32)
    o_ref[...] = (out + b2_ref[...]).astype(o_ref.dtype)


def mlp2layers_v2(x_user, x_prod, edge_label_index, w1, b1, w2, b2, *, tm=1024):
    """Replicates MLP2LayersV2.forward.

    x_user: [N_u, D] f32, x_prod: [N_p, D] f32
    edge_label_index: [2, E] int32
    w1: [H, 2D] (torch layout), b1: [H]
    w2: [1, H]  (torch layout), b2: [1]
    returns: squeezed [E] (scalar if E == 1)
    """
    _, D = x_user.shape
    H = w1.shape[0]
    assert w1.shape[1] == 2 * D
    E = edge_label_index.shape[1]

    # Adaptive edge tile: multiple of 256, never (much) larger than E itself.
    tm = min(tm, max(256, ((E + 255) // 256) * 256))
    E_pad = ((E + tm - 1) // tm) * tm

    # --- glue: gather edge endpoints, fold the concat, put edges on lanes ---
    # TODO(synk): gather kept in plain JAX (see header note).
    feats_t = jnp.concatenate(
        [x_user[edge_label_index[0]], x_prod[edge_label_index[1]]],
        axis=-1).T.astype(jnp.bfloat16)                         # (2D, E)
    if E_pad != E:
        feats_t = jnp.pad(feats_t, ((0, 0), (0, E_pad - E)))

    # --- weight prep: pad H to a multiple of 128; torch layouts used as-is ---
    H_pad = max(128, ((H + 127) // 128) * 128)
    w1_r = jnp.zeros((H_pad, 2 * D), jnp.bfloat16).at[:H, :].set(
        w1.astype(jnp.bfloat16))
    b1_r = jnp.zeros((H_pad, 1), jnp.float32).at[:H, 0].set(
        b1.astype(jnp.float32))
    w2_r = jnp.zeros((1, H_pad), jnp.float32).at[:, :H].set(
        w2.reshape(1, H).astype(jnp.float32))
    b2_r = b2.reshape(1, 1).astype(jnp.float32)

    grid = (E_pad // tm,)

    cost = pl.CostEstimate(
        flops=2 * E_pad * (2 * D) * H_pad + 2 * E_pad * H_pad,
        transcendentals=0,
        bytes_accessed=(2 * D * E_pad * 2            # bf16 edge features
                        + H_pad * 2 * D * 2          # bf16 w1
                        + H_pad * 4 + H_pad * 4 + 4  # f32 b1, w2, b2
                        + E_pad * 4),                # f32 output
    )

    out = pl.pallas_call(
        _mlp2_kernel,
        out_shape=jax.ShapeDtypeStruct((1, E_pad), jnp.float32),
        grid_spec=pltpu.PrefetchScalarGridSpec(
            num_scalar_prefetch=0,
            grid=grid,
            in_specs=[
                pl.BlockSpec((2 * D, tm), lambda i: (0, i)),     # edge feature tile
                pl.BlockSpec((H_pad, 2 * D), lambda i: (0, 0)),  # w1 (resident)
                pl.BlockSpec((H_pad, 1), lambda i: (0, 0)),      # b1 column
                pl.BlockSpec((1, H_pad), lambda i: (0, 0)),      # w2 row
                pl.BlockSpec((1, 1), lambda i: (0, 0)),          # b2
            ],
            out_specs=pl.BlockSpec((1, tm), lambda i: (0, i)),   # lane-dense out
        ),
        compiler_params=pltpu.CompilerParams(
            dimension_semantics=("parallel",)),
        cost_estimate=cost,
    )(feats_t, w1_r, b1_r, w2_r, b2_r)

    out = out[0, :E]          # drop edge padding
    return jnp.squeeze(out)   # matches torch .squeeze()


def init_params(key, input_dim, hidden_dim=256):
    """Deterministic init mimicking torch.nn.Linear default (uniform +-1/sqrt(fan_in))."""
    k1, k2, k3, k4 = jax.random.split(key, 4)
    fan1 = input_dim * 2
    bound1 = 1.0 / jnp.sqrt(fan1)
    w1 = jax.random.uniform(k1, (hidden_dim, fan1), jnp.float32, -bound1, bound1)
    b1 = jax.random.uniform(k2, (hidden_dim,), jnp.float32, -bound1, bound1)
    bound2 = 1.0 / jnp.sqrt(hidden_dim)
    w2 = jax.random.uniform(k3, (1, hidden_dim), jnp.float32, -bound2, bound2)
    b2 = jax.random.uniform(k4, (1,), jnp.float32, -bound2, bound2)
    return w1, b1, w2, b2


if __name__ == "__main__":
    key = jax.random.PRNGKey(0)
    k_u, k_p, k_e0, k_e1, k_par = jax.random.split(key, 5)

    # small synthetic shapes
    N_user, N_prod = 16, 12
    input_dim = 4
    hidden_dim = 32
    E = 8

    x_user = jax.random.normal(k_u, (N_user, input_dim), jnp.float32)
    x_prod = jax.random.normal(k_p, (N_prod, input_dim), jnp.float32)
    edge_label_index = jnp.stack([
        jax.random.randint(k_e0, (E,), 0, N_user, dtype=jnp.int32),
        jax.random.randint(k_e1, (E,), 0, N_prod, dtype=jnp.int32),
    ], axis=0)  # [2, E]

    w1, b1, w2, b2 = init_params(k_par, input_dim, hidden_dim)

    out = mlp2layers_v2(x_user, x_prod, edge_label_index, w1, b1, w2, b2)
    out = jax.block_until_ready(out)

    # reference check in plain JAX (pure f32; kernel streams bf16 -> loose tol)
    feats = jnp.concatenate(
        [x_user[edge_label_index[0]], x_prod[edge_label_index[1]]], axis=-1)
    ref = jnp.squeeze(jnp.maximum(feats @ w1.T + b1, 0.0) @ w2.T + b2)
    assert out.shape == (E,)
    assert jnp.allclose(out, ref, atol=5e-2, rtol=5e-2), (out, ref)

    print("KERNEL_OK")
</pallas_src>

<mosaic_0001>
module attributes {stable_mosaic.version = 11 : i64} {
  func.func @_mlp2_kernel(%arg0: i32, %arg1: memref<8x256xbf16, #tpu.memory_space<vmem>>, %arg2: memref<128x8xbf16, #tpu.memory_space<vmem>>, %arg3: memref<128x1xf32, #tpu.memory_space<vmem>>, %arg4: memref<1x128xf32, #tpu.memory_space<vmem>>, %arg5: memref<1x1xf32, #tpu.memory_space<vmem>>, %arg6: memref<1x256xf32, #tpu.memory_space<vmem>>) attributes {dimension_semantics = [#tpu.dimension_semantics<parallel>], iteration_bounds = array<i64: 1>, scalar_prefetch = 0 : i64, scratch_operands = 0 : i64, tpu.core_type = #tpu.core_type<tc>, window_params = [{transform_indices = @transform_0, window_bounds = array<i64: 8, 256>}, {pipeline_mode = #tpu.pipeline_mode<synchronous>, transform_indices = @transform_1, window_bounds = array<i64: 128, 8>}, {pipeline_mode = #tpu.pipeline_mode<synchronous>, transform_indices = @transform_2, window_bounds = array<i64: 128, 1>}, {pipeline_mode = #tpu.pipeline_mode<synchronous>, transform_indices = @transform_3, window_bounds = array<i64: 1, 128>}, {pipeline_mode = #tpu.pipeline_mode<synchronous>, transform_indices = @transform_4, window_bounds = array<i64: 1, 1>}, {transform_indices = @transform_5, window_bounds = array<i64: 1, 256>}]} {
    %c0 = arith.constant 0 : index
    %c0_0 = arith.constant 0 : index
    %0 = vector.load %arg2[%c0, %c0_0] : memref<128x8xbf16, #tpu.memory_space<vmem>>, vector<128x8xbf16>
    %c0_1 = arith.constant 0 : index
    %c0_2 = arith.constant 0 : index
    %1 = vector.load %arg1[%c0_1, %c0_2] : memref<8x256xbf16, #tpu.memory_space<vmem>>, vector<8x256xbf16>
    %cst = arith.constant dense<0.000000e+00> : vector<128x256xf32>
    %2 = tpu.matmul %0, %1, %cst {dimension_numbers = #tpu.dot_dimension_numbers<[1], [0], [0], [1], [0, 0, 1, 1], [], []>} : vector<128x8xbf16>, vector<8x256xbf16>, vector<128x256xf32> -> vector<128x256xf32>
    %c0_3 = arith.constant 0 : index
    %c0_4 = arith.constant 0 : index
    %3 = vector.load %arg3[%c0_3, %c0_4] : memref<128x1xf32, #tpu.memory_space<vmem>>, vector<128x1xf32>
    %4 = vector.broadcast %3 : vector<128x1xf32> to vector<128x256xf32>
    %5 = arith.addf %2, %4 : vector<128x256xf32>
    %cst_5 = arith.constant 0.000000e+00 : f32
    %6 = vector.broadcast %cst_5 : f32 to vector<128x256xf32>
    %7 = arith.maximumf %5, %6 : vector<128x256xf32>
    %c0_6 = arith.constant 0 : index
    %c0_7 = arith.constant 0 : index
    %8 = vector.load %arg4[%c0_6, %c0_7] : memref<1x128xf32, #tpu.memory_space<vmem>>, vector<1x128xf32>
    %cst_8 = arith.constant dense<0.000000e+00> : vector<1x256xf32>
    %9 = tpu.matmul %8, %7, %cst_8 {dimension_numbers = #tpu.dot_dimension_numbers<[1], [0], [0], [1], [0, 0, 1, 1], [], []>} : vector<1x128xf32>, vector<128x256xf32>, vector<1x256xf32> -> vector<1x256xf32>
    %c0_9 = arith.constant 0 : index
    %c0_10 = arith.constant 0 : index
    %10 = vector.load %arg5[%c0_9, %c0_10] : memref<1x1xf32, #tpu.memory_space<vmem>>, vector<1x1xf32>
    %11 = vector.broadcast %10 : vector<1x1xf32> to vector<1x256xf32>
    %12 = arith.addf %9, %11 : vector<1x256xf32>
    %c0_11 = arith.constant 0 : index
    %c0_12 = arith.constant 0 : index
    %13 = vector.load %arg6[%c0_11, %c0_12] : memref<1x256xf32, #tpu.memory_space<vmem>>, vector<1x256xf32>
    tpu.vector_store %arg6[%c0_11, %c0_12], %12 {strides = array<i32>} : memref<1x256xf32, #tpu.memory_space<vmem>>, vector<1x256xf32>,
    return
  }
  func.func @transform_0(%arg0: i32) -> (i32, i32) {
    %c0_i32 = arith.constant 0 : i32
    %c0_i32_0 = arith.constant 0 : i32
    return %c0_i32, %arg0 : i32, i32
  }
  func.func @transform_1(%arg0: i32) -> (i32, i32) {
    %c0_i32 = arith.constant 0 : i32
    %c0_i32_0 = arith.constant 0 : i32
    %c0_i32_1 = arith.constant 0 : i32
    return %c0_i32, %c0_i32_0 : i32, i32
  }
  func.func @transform_2(%arg0: i32) -> (i32, i32) {
    %c0_i32 = arith.constant 0 : i32
    %c0_i32_0 = arith.constant 0 : i32
    %c0_i32_1 = arith.constant 0 : i32
    return %c0_i32, %c0_i32_0 : i32, i32
  }
  func.func @transform_3(%arg0: i32) -> (i32, i32) {
    %c0_i32 = arith.constant 0 : i32
    %c0_i32_0 = arith.constant 0 : i32
    %c0_i32_1 = arith.constant 0 : i32
    return %c0_i32, %c0_i32_0 : i32, i32
  }
  func.func @transform_4(%arg0: i32) -> (i32, i32) {
    %c0_i32 = arith.constant 0 : i32
    %c0_i32_0 = arith.constant 0 : i32
    %c0_i32_1 = arith.constant 0 : i32
    return %c0_i32, %c0_i32_0 : i32, i32
  }
  func.func @transform_5(%arg0: i32) -> (i32, i32) {
    %c0_i32 = arith.constant 0 : i32
    %c0_i32_0 = arith.constant 0 : i32
    return %c0_i32, %arg0 : i32, i32
  }
}

</mosaic_0001>

<llo_original>
// kernel: tpu_custom_call.1
$region0: #{tpu_custom_call.1}
  #allocation0 [shape = 'u32[]', space=smem, size = 0x4, offset = 0x4, fixed_abs, tag = 'smem constant byte address 0x4 - core index']
  #allocation1 [shape = 'u32[144,128]{1,0:T(1,128)}', space=vmem, size = 0x12000, scoped, tag = 'internal scratch']
  #allocation2 [shape = 'f32[1,1]{1,0:T(1,128)S(1)}', space=vmem, size = 0x200, scoped, tag = 'scoped memory for tpu_custom_call.1']
  %s0 = inlined_call_operand.vmem [shape: bf16[8,256], index: 0, kind: input, shape index: {}]
  %s1 = inlined_call_operand.vmem [shape: bf16[128,8], index: 1, kind: input, shape index: {}]
  %s2 = inlined_call_operand.vmem [shape: f32[128,1], index: 2, kind: input, shape index: {}]
  %s3 = inlined_call_operand.vmem [shape: f32[1,128], index: 3, kind: input, shape index: {}]
  %s4 = inlined_call_operand.<no memory space> [shape: f32[1,1], index: 4, kind: input, shape index: {}]
  %s5 = inlined_call_operand.hbm [shape: f32[1,256], index: 5, kind: output, shape index: {}]
  %s6 = sld [smem:[#allocation0]]
  $region30: #{tpu_custom_call.1} parent=0
    _
  %s8 = ssub.s32 1, %s6
  %s9 = scalar_select 0, %s8, %s6
  %v10 = vstv %s4
  %11 = vst [vmem:[#allocation2] sm:$0x1] %v10
  $region1: #{tpu_custom_call.1} parent=0
    #allocation3 [shape = 'u8[1024]{0}', space=vmem, size = 0x400, scoped, tag = 'output window, operand 0, single buffered']
    #allocation4 [shape = 's32[1]{0}', space=sflag, size = 0x4, scoped, tag = 'scoped memory for tpu_custom_call.1']
    %12 = vsyncpa [#allocation4], 0
    // Predicated region
    $region2: #{tpu_custom_call.1} parent=1 // pred_check
      _
    $region3: #{tpu_custom_call.1} parent=1 // pred_check_branch
      %14 = sbr.rel (0) target = $region5
    $region4: #{tpu_custom_call.1} parent=1 // pred_region
      _
    $region5: #{tpu_custom_call.1} parent=1 // pred_fallthru
      _
    // Predicated region
    $region6: #{tpu_custom_call.1} parent=1 // pred_check
      _
    $region7: #{tpu_custom_call.1} parent=1 // pred_check_branch
      %16 = sbr.rel (0) target = $region9
    $region8: #{tpu_custom_call.1} parent=1 // pred_region
      _
    $region9: #{tpu_custom_call.1} parent=1 // pred_fallthru
      _
    // Predicated region
    $region10: #{tpu_custom_call.1} parent=1 // pred_check
      _
    $region11: #{tpu_custom_call.1} parent=1 // pred_check_branch
      %18 = sbr.rel (0) target = $region13
    $region12: #{tpu_custom_call.1} parent=1 // pred_region
      _
    $region13: #{tpu_custom_call.1} parent=1 // pred_fallthru
      _
    // Predicated region
    $region14: #{tpu_custom_call.1} parent=1 // pred_check
      _
    $region15: #{tpu_custom_call.1} parent=1 // pred_check_branch
      %20 = sbr.rel (0) target = $region17
    $region16: #{tpu_custom_call.1} parent=1 // pred_region
      _
    $region17: #{tpu_custom_call.1} parent=1 // pred_fallthru
      _
    // Predicated region
    $region18: #{tpu_custom_call.1} parent=1 // pred_check
      _
    $region19: #{tpu_custom_call.1} parent=1 // pred_check_branch
      %22 = sbr.rel (0) target = $region21
    $region20: #{tpu_custom_call.1} parent=1 // pred_region
      _
    $region21: #{tpu_custom_call.1} parent=1 // pred_fallthru
      _
    %v24 = vld [vmem:[%s1] sm:$0xf]
    %v25 = vld [vmem:[%s1 + $0x4] sm:$0xf]
    %v26 = vld [vmem:[%s1 + $0x8] sm:$0xf]
    %v27 = vld [vmem:[%s1 + $0xc] sm:$0xf]
    %v28 = vld [vmem:[%s1 + $0x10] sm:$0xf]
    %v29 = vld [vmem:[%s1 + $0x14] sm:$0xf]
    %v30 = vld [vmem:[%s1 + $0x18] sm:$0xf]
    %v31 = vld [vmem:[%s1 + $0x1c] sm:$0xf]
    %v32 = vld [vmem:[%s1 + $0x20] sm:$0xf]
    %v33 = vld [vmem:[%s1 + $0x24] sm:$0xf]
    %v34 = vld [vmem:[%s1 + $0x28] sm:$0xf]
    %v35 = vld [vmem:[%s1 + $0x2c] sm:$0xf]
    %v36 = vld [vmem:[%s1 + $0x30] sm:$0xf]
    %v37 = vld [vmem:[%s1 + $0x34] sm:$0xf]
    %v38 = vld [vmem:[%s1 + $0x38] sm:$0xf]
    %v39 = vld [vmem:[%s1 + $0x3c] sm:$0xf]
    %v40 = vld [vmem:[%s0] sm:$0xff]
    %v41 = vld [vmem:[%s2] sm:$0xff]
    %v42 = vld [vmem:[%s2 + $0x8] sm:$0xff]
    %v43 = vld [vmem:[%s2 + $0x10] sm:$0xff]
    %v44 = vld [vmem:[%s2 + $0x18] sm:$0xff]
    %v45 = vld [vmem:[%s2 + $0x20] sm:$0xff]
    %v46 = vld [vmem:[%s2 + $0x28] sm:$0xff]
    %v47 = vld [vmem:[%s2 + $0x30] sm:$0xff]
    %v48 = vld [vmem:[%s2 + $0x38] sm:$0xff]
    %v49 = vld [vmem:[%s2 + $0x40] sm:$0xff]
    %v50 = vld [vmem:[%s2 + $0x48] sm:$0xff]
    %v51 = vld [vmem:[%s2 + $0x50] sm:$0xff]
    %v52 = vld [vmem:[%s2 + $0x58] sm:$0xff]
    %v53 = vld [vmem:[%s2 + $0x60] sm:$0xff]
    %v54 = vld [vmem:[%s2 + $0x68] sm:$0xff]
    %v55 = vld [vmem:[%s2 + $0x70] sm:$0xff]
    %v56 = vld [vmem:[%s2 + $0x78] sm:$0xff]
    %58 = vset.pattern.permute.xlu0 0
    %59 = vperm.xlu0 %58, %v41
    %v60 = vpop.permute.xlu0 %59
    %63 = vset.pattern.permute.xlu0 0
    %64 = vperm.xlu0 %63, %v42
    %v65 = vpop.permute.xlu0 %64
    %68 = vset.pattern.permute.xlu0 0
    %69 = vperm.xlu0 %68, %v43
    %v70 = vpop.permute.xlu0 %69
    %73 = vset.pattern.permute.xlu0 0
    %74 = vperm.xlu0 %73, %v44
    %v75 = vpop.permute.xlu0 %74
    %78 = vset.pattern.permute.xlu0 0
    %79 = vperm.xlu0 %78, %v45
    %v80 = vpop.permute.xlu0 %79
    %83 = vset.pattern.permute.xlu0 0
    %84 = vperm.xlu0 %83, %v46
    %v85 = vpop.permute.xlu0 %84
    %88 = vset.pattern.permute.xlu0 0
    %89 = vperm.xlu0 %88, %v47
    %v90 = vpop.permute.xlu0 %89
    %93 = vset.pattern.permute.xlu0 0
    %94 = vperm.xlu0 %93, %v48
    %v95 = vpop.permute.xlu0 %94
    %98 = vset.pattern.permute.xlu0 0
    %99 = vperm.xlu0 %98, %v49
    %v100 = vpop.permute.xlu0 %99
    %103 = vset.pattern.permute.xlu0 0
    %104 = vperm.xlu0 %103, %v50
    %v105 = vpop.permute.xlu0 %104
    %108 = vset.pattern.permute.xlu0 0
    %109 = vperm.xlu0 %108, %v51
    %v110 = vpop.permute.xlu0 %109
    %113 = vset.pattern.permute.xlu0 0
    %114 = vperm.xlu0 %113, %v52
    %v115 = vpop.permute.xlu0 %114
    %118 = vset.pattern.permute.xlu0 0
    %119 = vperm.xlu0 %118, %v53
    %v120 = vpop.permute.xlu0 %119
    %123 = vset.pattern.permute.xlu0 0
    %124 = vperm.xlu0 %123, %v54
    %v125 = vpop.permute.xlu0 %124
    %128 = vset.pattern.permute.xlu0 0
    %129 = vperm.xlu0 %128, %v55
    %v130 = vpop.permute.xlu0 %129
    %133 = vset.pattern.permute.xlu0 0
    %134 = vperm.xlu0 %133, %v56
    %v135 = vpop.permute.xlu0 %134
    %v153 = vunpack.c.l.b16 %v24
    %v154 = vunpack.c.l.b16 %v25
    %v155 = vunpack.c.l.b16 %v26
    %v156 = vunpack.c.l.b16 %v27
    %v157 = vunpack.c.l.b16 %v28
    %v158 = vunpack.c.l.b16 %v29
    %v159 = vunpack.c.l.b16 %v30
    %v160 = vunpack.c.l.b16 %v31
    %v161 = vunpack.c.l.b16 %v32
    %v162 = vunpack.c.l.b16 %v33
    %v163 = vunpack.c.l.b16 %v34
    %v164 = vunpack.c.l.b16 %v35
    %v165 = vunpack.c.l.b16 %v36
    %v166 = vunpack.c.l.b16 %v37
    %v167 = vunpack.c.l.b16 %v38
    %v168 = vunpack.c.l.b16 %v39
    %v169 = vpack.c.b16 %v154, %v153
    %v170 = vpack.c.b16 %v156, %v155
    %v171 = vpack.c.b16 %v158, %v157
    %v172 = vpack.c.b16 %v160, %v159
    %v173 = vpack.c.b16 %v162, %v161
    %v174 = vpack.c.b16 %v164, %v163
    %v175 = vpack.c.b16 %v166, %v165
    %v176 = vpack.c.b16 %v168, %v167
    %v178 = vunpack.c.l.b16 %v40
    %v179 = vunpack.c.h.b16 %v40
    %v180 = vpack.c.b16 %v178, %v178
    %v181 = vpack.c.b16 %v179, %v179
    %vm182 = vcmask 64512
    %v184 = vsel %vm182, %v169, 0
    %v187 = vsel %vm182, %v170, 0
    %v190 = vsel %vm182, %v171, 0
    %v193 = vsel %vm182, %v172, 0
    %v196 = vsel %vm182, %v173, 0
    %v199 = vsel %vm182, %v174, 0
    %v202 = vsel %vm182, %v175, 0
    %v205 = vsel %vm182, %v176, 0
    %vm207 = vcmask 1043456
    %v209 = vsel %vm207, %v180, 0
    %v212 = vsel %vm207, %v181, 0
    %214 = vmatprep.subr.bf16.mxu0 %v212
    %215 = vmatpush1.bf16.msra.mxu0 %v209
    %216 = vmatprep.subr.bf16.mxu0 0
    %217 = vmatpush1.bf16.msra.mxu0 0
    %218 = vmatprep.subr.bf16.mxu0 0
    %219 = vmatpush1.bf16.msra.mxu0 0
    %220 = vmatprep.subr.bf16.mxu0 0
    %221 = vmatpush1.bf16.msra.mxu0 0
    %222 = vmatprep.subr.bf16.mxu0 0
    %223 = vmatpush1.bf16.msra.mxu0 0
    %224 = vmatprep.subr.bf16.mxu0 0
    %225 = vmatpush1.bf16.msra.mxu0 0
    %226 = vmatprep.subr.bf16.mxu0 0
    %227 = vmatpush1.bf16.msra.mxu0 0
    %228 = vmatprep.subr.bf16.mxu0 0
    %229 = vmatpush1.bf16.msra.mxu0 0
    %230 = vmatprep.subr.bf16.mxu0 0
    %231 = vmatpush1.bf16.msra.mxu0 0
    %232 = vmatprep.subr.bf16.mxu0 0
    %233 = vmatpush1.bf16.msra.mxu0 0
    %234 = vmatprep.subr.bf16.mxu0 0
    %235 = vmatpush1.bf16.msra.mxu0 0
    %236 = vmatprep.subr.bf16.mxu0 0
    %237 = vmatpush1.bf16.msra.mxu0 0
    %238 = vmatprep.subr.bf16.mxu0 0
    %239 = vmatpush1.bf16.msra.mxu0 0
    %240 = vmatprep.subr.bf16.mxu0 0
    %241 = vmatpush1.bf16.msra.mxu0 0
    %242 = vmatprep.subr.bf16.mxu0 0
    %243 = vmatpush1.bf16.msra.mxu0 0
    %244 = vmatprep.subr.bf16.mxu0 0
    %245 = vmatpush1.bf16.msra.mxu0 0
    %246 = vmatprep.mubr.bf16.mxu0 0
    %247 = vmatmul.mubr.bf16.gmra.mrb[0].mxu0 %v184
    %v248 = vpop.f32.mrb[0].mxu0
    %v249 = vadd.f32 %v60, %v248
    %v250 = vpop.f32.mrb[0].mxu0
    %v251 = vadd.f32 %v60, %v250
    %v252 = vpop.f32.mrb[0].mxu0
    %v253 = vadd.f32 %v65, %v252
    %v254 = vpop.f32.mrb[0].mxu0
    %v255 = vadd.f32 %v65, %v254
    %256 = vmatprep.mubr.bf16.mxu0 0
    %257 = vmatmul.mubr.bf16.gmra.mrb[0].mxu0 %v187
    %v258 = vpop.f32.mrb[0].mxu0
    %v259 = vadd.f32 %v70, %v258
    %v260 = vpop.f32.mrb[0].mxu0
    %v261 = vadd.f32 %v70, %v260
    %v262 = vpop.f32.mrb[0].mxu0
    %v263 = vadd.f32 %v75, %v262
    %v264 = vpop.f32.mrb[0].mxu0
    %v265 = vadd.f32 %v75, %v264
    %266 = vmatprep.mubr.bf16.mxu0 0
    %267 = vmatmul.mubr.bf16.gmra.mrb[0].mxu0 %v190
    %v268 = vpop.f32.mrb[0].mxu0
    %v269 = vadd.f32 %v80, %v268
    %v270 = vpop.f32.mrb[0].mxu0
    %v271 = vadd.f32 %v80, %v270
    %v272 = vpop.f32.mrb[0].mxu0
    %v273 = vadd.f32 %v85, %v272
    %v274 = vpop.f32.mrb[0].mxu0
    %v275 = vadd.f32 %v85, %v274
    %276 = vmatprep.mubr.bf16.mxu0 0
    %277 = vmatmul.mubr.bf16.gmra.mrb[0].mxu0 %v193
    %v278 = vpop.f32.mrb[0].mxu0
    %v279 = vadd.f32 %v90, %v278
    %v280 = vpop.f32.mrb[0].mxu0
    %v281 = vadd.f32 %v90, %v280
    %v282 = vpop.f32.mrb[0].mxu0
    %v283 = vadd.f32 %v95, %v282
    %v284 = vpop.f32.mrb[0].mxu0
    %v285 = vadd.f32 %v95, %v284
    %286 = vmatprep.mubr.bf16.mxu0 0
    %287 = vmatmul.mubr.bf16.gmra.mrb[0].mxu0 %v196
    %v288 = vpop.f32.mrb[0].mxu0
    %v289 = vadd.f32 %v100, %v288
    %v290 = vpop.f32.mrb[0].mxu0
    %v291 = vadd.f32 %v100, %v290
    %v292 = vpop.f32.mrb[0].mxu0
    %v293 = vadd.f32 %v105, %v292
    %v294 = vpop.f32.mrb[0].mxu0
    %v295 = vadd.f32 %v105, %v294
    %296 = vmatprep.mubr.bf16.mxu0 0
    %297 = vmatmul.mubr.bf16.gmra.mrb[0].mxu0 %v199
    %v298 = vpop.f32.mrb[0].mxu0
    %v299 = vadd.f32 %v110, %v298
    %v300 = vpop.f32.mrb[0].mxu0
    %v301 = vadd.f32 %v110, %v300
    %v302 = vpop.f32.mrb[0].mxu0
    %v303 = vadd.f32 %v115, %v302
    %v304 = vpop.f32.mrb[0].mxu0
    %v305 = vadd.f32 %v115, %v304
    %306 = vmatprep.mubr.bf16.mxu0 0
    %307 = vmatmul.mubr.bf16.gmra.mrb[0].mxu0 %v202
    %v308 = vpop.f32.mrb[0].mxu0
    %v309 = vadd.f32 %v120, %v308
    %v310 = vpop.f32.mrb[0].mxu0
    %v311 = vadd.f32 %v120, %v310
    %v312 = vpop.f32.mrb[0].mxu0
    %v313 = vadd.f32 %v125, %v312
    %v314 = vpop.f32.mrb[0].mxu0
    %v315 = vadd.f32 %v125, %v314
    %316 = vmatprep.mubr.bf16.mxu0 0
    %317 = vmatmul.mubr.bf16.gmra.mrb[0].mxu0 %v205
    %v318 = vpop.f32.mrb[0].mxu0
    %v319 = vadd.f32 %v130, %v318
    %v320 = vpop.f32.mrb[0].mxu0
    %v321 = vadd.f32 %v130, %v320
    %v322 = vpop.f32.mrb[0].mxu0
    %v323 = vadd.f32 %v135, %v322
    %v324 = vpop.f32.mrb[0].mxu0
    %v325 = vadd.f32 %v135, %v324
    %326 = vdwg.mxu0
    %v327 = vmax.f32 %v249, 0.0
    %v328 = vmax.f32 %v251, 0.0
    %v329 = vmax.f32 %v253, 0.0
    %v330 = vmax.f32 %v255, 0.0
    %v331 = vmax.f32 %v259, 0.0
    %v332 = vmax.f32 %v261, 0.0
    %v333 = vmax.f32 %v263, 0.0
    %v334 = vmax.f32 %v265, 0.0
    %v335 = vmax.f32 %v269, 0.0
    %v336 = vmax.f32 %v271, 0.0
    %v337 = vmax.f32 %v273, 0.0
    %v338 = vmax.f32 %v275, 0.0
    %v339 = vmax.f32 %v279, 0.0
    %v340 = vmax.f32 %v281, 0.0
    %v341 = vmax.f32 %v283, 0.0
    %v342 = vmax.f32 %v285, 0.0
    %v343 = vmax.f32 %v289, 0.0
    %v344 = vmax.f32 %v291, 0.0
    %v345 = vmax.f32 %v293, 0.0
    %v346 = vmax.f32 %v295, 0.0
    %v347 = vmax.f32 %v299, 0.0
    %v348 = vmax.f32 %v301, 0.0
    %v349 = vmax.f32 %v303, 0.0
    %v350 = vmax.f32 %v305, 0.0
    %v351 = vmax.f32 %v309, 0.0
    %v352 = vmax.f32 %v311, 0.0
    %v353 = vmax.f32 %v313, 0.0
    %v354 = vmax.f32 %v315, 0.0
    %v355 = vmax.f32 %v319, 0.0
    %v356 = vmax.f32 %v321, 0.0
    %v357 = vmax.f32 %v323, 0.0
    %v358 = vmax.f32 %v325, 0.0
    %v359 = vld [vmem:[%s3] sm:$0x1]
    %v360 = vld [vmem:[#allocation2] sm:$0x1]
    %362 = vset.pattern.permute.xlu0 0
    %363 = vperm.xlu0 %362, %v360
    %v364 = vpop.permute.xlu0 %363
    %v366 = vlaneseq
    %v367 = vshrl.u32 %v366, 7
    %v368 = vsub.s32 0, %v367
    %v369 = vrot.slane %v364, %v368
    %370 = vmatprep.subr.mxu0 %v328
    %371 = vmatpush1.msra.mxu0 %v327
    %372 = vmatprep.subr.mxu0 %v330
    %373 = vmatpush1.msra.mxu0 %v329
    %374 = vmatprep.subr.mxu0 %v332
    %375 = vmatpush1.msra.mxu0 %v331
    %376 = vmatprep.subr.mxu0 %v334
    %377 = vmatpush1.msra.mxu0 %v333
    %378 = vmatprep.subr.mxu0 %v336
    %379 = vmatpush1.msra.mxu0 %v335
    %380 = vmatprep.subr.mxu0 %v338
    %381 = vmatpush1.msra.mxu0 %v337
    %382 = vmatprep.subr.mxu0 %v340
    %383 = vmatpush1.msra.mxu0 %v339
    %384 = vmatprep.subr.mxu0 %v342
    %385 = vmatpush1.msra.mxu0 %v341
    %386 = vmatprep.subr.mxu0 %v344
    %387 = vmatpush1.msra.mxu0 %v343
    %388 = vmatprep.subr.mxu0 %v346
    %389 = vmatpush1.msra.mxu0 %v345
    %390 = vmatprep.subr.mxu0 %v348
    %391 = vmatpush1.msra.mxu0 %v347
    %392 = vmatprep.subr.mxu0 %v350
    %393 = vmatpush1.msra.mxu0 %v349
    %394 = vmatprep.subr.mxu0 %v352
    %395 = vmatpush1.msra.mxu0 %v351
    %396 = vmatprep.subr.mxu0 %v354
    %397 = vmatpush1.msra.mxu0 %v353
    %398 = vmatprep.subr.mxu0 %v356
    %399 = vmatpush1.msra.mxu0 %v355
    %400 = vmatprep.subr.mxu0 %v358
    %401 = vmatpush1.msra.mxu0 %v357
    %402 = vmatprep.subr.mxu0 0.0
    %403 = vmatpush1.msra.mxu0 0.0
    %404 = vmatprep.subr.mxu0 0.0
    %405 = vmatpush1.msra.mxu0 0.0
    %406 = vmatprep.subr.mxu0 0.0
    %407 = vmatpush1.msra.mxu0 0.0
    %408 = vmatprep.subr.mxu0 0.0
    %409 = vmatpush1.msra.mxu0 0.0
    %410 = vmatprep.subr.mxu0 0.0
    %411 = vmatpush1.msra.mxu0 0.0
    %412 = vmatprep.subr.mxu0 0.0
    %413 = vmatpush1.msra.mxu0 0.0
    %414 = vmatprep.subr.mxu0 0.0
    %415 = vmatpush1.msra.mxu0 0.0
    %416 = vmatprep.subr.mxu0 0.0
    %417 = vmatpush1.msra.mxu0 0.0
    %418 = vmatprep.subr.mxu0 0.0
    %419 = vmatpush1.msra.mxu0 0.0
    %420 = vmatprep.subr.mxu0 0.0
    %421 = vmatpush1.msra.mxu0 0.0
    %422 = vmatprep.subr.mxu0 0.0
    %423 = vmatpush1.msra.mxu0 0.0
    %424 = vmatprep.subr.mxu0 0.0
    %425 = vmatpush1.msra.mxu0 0.0
    %426 = vmatprep.subr.mxu0 0.0
    %427 = vmatpush1.msra.mxu0 0.0
    %428 = vmatprep.subr.mxu0 0.0
    %429 = vmatpush1.msra.mxu0 0.0
    %430 = vmatprep.subr.mxu0 0.0
    %431 = vmatpush1.msra.mxu0 0.0
    %432 = vmatprep.subr.mxu0 0.0
    %433 = vmatpush1.msra.mxu0 0.0
    %434 = vmatprep.mubr.f32.mxu0 0.0
    %435 = vmatmul.mubr.f32.gmra.mrb[0].mxu0 %v359
    %v436 = vpop.f32.mrb[0].mxu0
    %v437 = vadd.f32 %v369, %v436
    %v438 = vpop.f32.mrb[0].mxu0
    %v439 = vadd.f32 %v369, %v438
    %440 = vdwg.mxu0
    %v443 = vcombine.low %v437, %v439
    %v445 = vunpack.c.l.s4 1966171168
    %v446 = vunpack.c.0.s8 %v445
    %v447 = vlaneseq
    %v448 = vshrl.u32 %v447, 7
    %v449 = vsub.s32 %v446, %v448
    %v450 = vrot.slane %v443, %v449
    %v452 = vunpack.c.l.s4 1966171168
    %v453 = vunpack.c.0.s8 %v452
    %v454 = vlaneseq
    %v455 = vshrl.u32 %v454, 7
    %v456 = vsub.s32 %v453, %v455
    %v457 = vrot.slane %v450, %v456
    %v459 = vlaneseq
    %vm460 = vcmp.ge.s32.totalorder %v459, 0
    %vm461 = vcmp.lt.s32.totalorder %v459, 256
    %vm462 = vmand %vm460, %vm461
    %463 = vst.msk [vmem:[#allocation3] sm:$0x3] %vm462, %v457
    // Predicated region
    $region22: #{tpu_custom_call.1} parent=1 // pred_check
      _
    $region23: #{tpu_custom_call.1} parent=1 // pred_check_branch
      %465 = sbr.rel (0) target = $region25
    $region24: #{tpu_custom_call.1} parent=1 // pred_region
      %s467 = ssub.s32 32, 32
      %468 = vsyncadd [#allocation4], %s467
      %s470 = sshll.u32 [#allocation3], 4
      %s471 = int_to_ptr.vmem [resolvable:$true] %s470
      %473 = dma.vmem_to_hbm [thread:$0]  %s471, 32, %s5, [#allocation4]
    $region25: #{tpu_custom_call.1} parent=1 // pred_fallthru
      _
    // Predicated region
    $region26: #{tpu_custom_call.1} parent=1 // pred_check
      _
    $region27: #{tpu_custom_call.1} parent=1 // pred_check_branch
      %475 = sbr.rel (0) target = $region29
    $region28: #{tpu_custom_call.1} parent=1 // pred_region
      %476 = dma.done [#allocation4], 32
    $region29: #{tpu_custom_call.1} parent=1 // pred_fallthru
      _
    %477 = vsyncpa [#allocation4], 1

</llo_original>
